<compile_context>
chip_gen: v6e
topology: v6e:2x2x1
jax: 0.10.0
libtpu: 0.0.40
codegen_flags: <defaults>
</compile_context>

<pallas_src>
import functools

import jax
import jax.numpy as jnp
import numpy as np
from jax.experimental import pallas as pl
from jax.experimental.pallas import tpu as pltpu

_SUBLANE = 8            # vreg sublane count (second-to-last dim granularity)
_LANE = 128             # vreg lane width (last dim granularity)
_TARGET_TILE_BYTES = 2 * 1024 * 1024   # ~2 MiB/tile -> ~8 MiB double-buffered working set


def _shift_bias_kernel(x_ref, o_ref, *, bias):
    # Elementwise VPU add; `bias` is a compile-time constant (no SMEM traffic).
    # Weak-typed scalar keeps the add in x's native dtype (f32/bf16/...).
    o_ref[...] = (x_ref[...] + bias).astype(o_ref.dtype)


def _round_up(x: int, m: int) -> int:
    return ((x + m - 1) // m) * m


def _round_down(x: int, m: int) -> int:
    return (x // m) * m


def shift_bias(x: jax.Array, bias: float) -> jax.Array:
    """JAX/Pallas equivalent of ShiftBias(bias).forward(x): returns x + bias."""
    orig_shape = x.shape
    dtype = x.dtype
    itemsize = jnp.dtype(dtype).itemsize
    total = int(np.prod(orig_shape)) if len(orig_shape) else 1

    # Pick the widest lane-dense row width that divides the element count so no
    # pad / slice copies are needed in the wrapper.
    width = None
    for cand in (1024, 512, 256, _LANE):
        if total % cand == 0:
            width = cand
            break

    if width is not None:
        rows = total // width
        x2d = x.reshape(rows, width)          # contiguous reshape: free
        needs_tail_slice = False
    else:
        # Rare ragged case (total % 128 != 0): pad the tail of the flat view.
        width = _LANE
        rows = pl.cdiv(total, width)
        flat = jnp.pad(x.reshape(-1), (0, rows * width - total))
        x2d = flat.reshape(rows, width)
        needs_tail_slice = True

    # Tile rows: target ~2 MiB per tile, multiple of 8 sublanes, and keep the
    # grid length >= 2 when possible so both v7x TensorCores get work.
    if rows <= _SUBLANE:
        tm = rows                              # full-extent block is always legal
    else:
        target_tm = max(_SUBLANE, _TARGET_TILE_BYTES // (width * itemsize))
        target_tm = _round_up(target_tm, _SUBLANE)
        half = _round_down(rows // 2, _SUBLANE)
        if half >= _SUBLANE:
            target_tm = min(target_tm, half)   # guarantees >= 2 grid steps
        tm = min(target_tm, rows)
        if tm < rows:
            tm = _round_up(tm, _SUBLANE)       # (8,128)-aligned block shape
        # (ragged final block, if any, is masked by the Pallas pipeline)
    grid = (pl.cdiv(rows, tm),)

    kernel = functools.partial(_shift_bias_kernel, bias=bias)

    out2d = pl.pallas_call(
        kernel,
        out_shape=jax.ShapeDtypeStruct((rows, width), dtype),
        grid=grid,
        in_specs=[pl.BlockSpec((tm, width), lambda i: (i, 0))],
        out_specs=pl.BlockSpec((tm, width), lambda i: (i, 0)),
        compiler_params=pltpu.CompilerParams(
            dimension_semantics=("parallel",),   # megacore sharding on v7x
        ),
        cost_estimate=pl.CostEstimate(
            flops=rows * width,
            transcendentals=0,
            bytes_accessed=2 * rows * width * itemsize,
        ),
    )(x2d)

    if needs_tail_slice:
        out = out2d.reshape(-1)[:total].reshape(orig_shape)
    else:
        out = out2d.reshape(orig_shape)
    return out


if __name__ == "__main__":
    key = jax.random.PRNGKey(0)
    bias = 0.5

    # Main case: shapes consistent with the module's forward (B, C, H, W).
    B, C, H, W = 2, 4, 16, 16
    x = jax.random.normal(key, (B, C, H, W), dtype=jnp.float32)
    out = jax.block_until_ready(shift_bias(x, bias))
    ref = x + bias
    assert out.shape == x.shape, out.shape
    assert out.dtype == x.dtype, out.dtype
    np.testing.assert_allclose(np.asarray(out), np.asarray(ref), rtol=1e-6, atol=1e-6)

    # Ragged-tail fallback case (element count not a multiple of 128).
    x2 = jax.random.normal(jax.random.PRNGKey(1), (2, 3, 37), dtype=jnp.float32)
    out2 = jax.block_until_ready(shift_bias(x2, bias))
    np.testing.assert_allclose(np.asarray(out2), np.asarray(x2 + bias),
                               rtol=1e-6, atol=1e-6)

    print("KERNEL_OK")
</pallas_src>

<mosaic_0001>
module attributes {stable_mosaic.version = 11 : i64} {
  func.func @_shift_bias_kernel(%arg0: i32, %arg1: memref<2x1024xf32, #tpu.memory_space<vmem>>, %arg2: memref<2x1024xf32, #tpu.memory_space<vmem>>) attributes {dimension_semantics = [#tpu.dimension_semantics<parallel>], iteration_bounds = array<i64: 1>, scalar_prefetch = 0 : i64, scratch_operands = 0 : i64, tpu.core_type = #tpu.core_type<tc>, window_params = [{transform_indices = @transform_0, window_bounds = array<i64: 2, 1024>}, {transform_indices = @transform_1, window_bounds = array<i64: 2, 1024>}]} {
    %c0 = arith.constant 0 : index
    %c0_0 = arith.constant 0 : index
    %0 = vector.load %arg1[%c0, %c0_0] : memref<2x1024xf32, #tpu.memory_space<vmem>>, vector<2x1024xf32>
    %cst = arith.constant 5.000000e-01 : f32
    %1 = vector.broadcast %cst : f32 to vector<2x1024xf32>
    %2 = arith.addf %0, %1 : vector<2x1024xf32>
    %c0_1 = arith.constant 0 : index
    %c0_2 = arith.constant 0 : index
    %3 = vector.load %arg2[%c0_1, %c0_2] : memref<2x1024xf32, #tpu.memory_space<vmem>>, vector<2x1024xf32>
    tpu.vector_store %arg2[%c0_1, %c0_2], %2 {strides = array<i32>} : memref<2x1024xf32, #tpu.memory_space<vmem>>, vector<2x1024xf32>,
    return
  }
  func.func @transform_0(%arg0: i32) -> (i32, i32) {
    %c0_i32 = arith.constant 0 : i32
    %c0_i32_0 = arith.constant 0 : i32
    return %arg0, %c0_i32 : i32, i32
  }
  func.func @transform_1(%arg0: i32) -> (i32, i32) {
    %c0_i32 = arith.constant 0 : i32
    %c0_i32_0 = arith.constant 0 : i32
    return %arg0, %c0_i32 : i32, i32
  }
}

</mosaic_0001>

<llo_original>
// kernel: tpu_custom_call.1
$region0: #{tpu_custom_call.1}
  #allocation0 [shape = 'u32[]', space=smem, size = 0x4, offset = 0x4, fixed_abs, tag = 'smem constant byte address 0x4 - core index']
  #allocation1 [shape = 'u32[144,128]{1,0:T(1,128)}', space=vmem, size = 0x12000, scoped, tag = 'internal scratch']
  %s0 = inlined_call_operand.hbm [shape: f32[2,1024], index: 0, kind: input, shape index: {}]
  %s1 = inlined_call_operand.hbm [shape: f32[2,1024], index: 1, kind: output, shape index: {}]
  %s2 = sld [smem:[#allocation0]]
  $region18: #{tpu_custom_call.1} parent=0
    _
  %s4 = ssub.s32 1, %s2
  %s5 = scalar_select 0, %s4, %s2
  $region1: #{tpu_custom_call.1} parent=0
    #allocation2 [shape = 'u8[8192]{0}', space=vmem, size = 0x2000, scoped, tag = 'input window, operand 0, single buffered']
    #allocation3 [shape = 's32[1]{0}', space=sflag, size = 0x4, scoped, tag = 'scoped memory for tpu_custom_call.1']
    #allocation4 [shape = 's32[1]{0}', space=sflag, size = 0x4, scoped, tag = 'scoped memory for tpu_custom_call.1']
    #allocation5 [shape = 'u8[8192]{0}', space=vmem, size = 0x2000, scoped, tag = 'output window, operand 0, single buffered']
    %6 = vsyncpa [#allocation3], 0
    %7 = vsyncpa [#allocation4], 0
    // Predicated region
    $region2: #{tpu_custom_call.1} parent=1 // pred_check
      _
    $region3: #{tpu_custom_call.1} parent=1 // pred_check_branch
      %9 = sbr.rel (0) target = $region5
    $region4: #{tpu_custom_call.1} parent=1 // pred_region
      %s11 = ssub.s32 256, 256
      %12 = vsyncadd [#allocation3], %s11
      %s14 = sshll.u32 [#allocation2], 4
      %s15 = int_to_ptr.vmem [resolvable:$true] %s14
      %17 = dma.hbm_to_vmem [thread:$0]  %s0, 256, %s15, [#allocation3]
    $region5: #{tpu_custom_call.1} parent=1 // pred_fallthru
      _
    // Predicated region
    $region6: #{tpu_custom_call.1} parent=1 // pred_check
      _
    $region7: #{tpu_custom_call.1} parent=1 // pred_check_branch
      %19 = sbr.rel (0) target = $region9
    $region8: #{tpu_custom_call.1} parent=1 // pred_region
      %20 = dma.done [#allocation3], 256
    $region9: #{tpu_custom_call.1} parent=1 // pred_fallthru
      _
    %v21 = vld [vmem:[#allocation2] sm:$0xff]
    %v22 = vld [vmem:[#allocation2 + $0x8] sm:$0xff]
    %v23 = vadd.f32 %v21, 0.5
    %v24 = vadd.f32 %v22, 0.5
    %25 = vst [vmem:[#allocation5] sm:$0xff] %v23
    %26 = vst [vmem:[#allocation5 + $0x8] sm:$0xff] %v24
    // Predicated region
    $region10: #{tpu_custom_call.1} parent=1 // pred_check
      _
    $region11: #{tpu_custom_call.1} parent=1 // pred_check_branch
      %28 = sbr.rel (0) target = $region13
    $region12: #{tpu_custom_call.1} parent=1 // pred_region
      %s30 = ssub.s32 256, 256
      %31 = vsyncadd [#allocation4], %s30
      %s33 = sshll.u32 [#allocation5], 4
      %s34 = int_to_ptr.vmem [resolvable:$true] %s33
      %36 = dma.vmem_to_hbm [thread:$0]  %s34, 256, %s1, [#allocation4]
    $region13: #{tpu_custom_call.1} parent=1 // pred_fallthru
      _
    // Predicated region
    $region14: #{tpu_custom_call.1} parent=1 // pred_check
      _
    $region15: #{tpu_custom_call.1} parent=1 // pred_check_branch
      %38 = sbr.rel (0) target = $region17
    $region16: #{tpu_custom_call.1} parent=1 // pred_region
      %39 = dma.done [#allocation4], 256
    $region17: #{tpu_custom_call.1} parent=1 // pred_fallthru
      _
    %40 = vsyncpa [#allocation3], 1
    %41 = vsyncpa [#allocation4], 1

</llo_original>
